<compile_context>
chip_gen: v5e
topology: v5e:2x2
jax: 0.10.0
libtpu: 0.0.40
codegen_flags: <defaults>
</compile_context>

<pallas_src>
import functools
import math

import jax
import jax.numpy as jnp
from jax.experimental import pallas as pl
from jax.experimental.pallas import tpu as pltpu


def _copy_kernel(x_ref, o_ref):
    # The squeezed size-1 dim is dropped via pl.Squeezed() on the input
    # BlockSpec, so both refs are the same (bL, tr, tc) lane-dense tile;
    # the "compute" of squeeze is just this copy.
    o_ref[...] = x_ref[...]


@functools.lru_cache(maxsize=1)
def _hw_params():
    """Generation-aware tile / VMEM / dispatch parameters."""
    kind = ""
    try:
        kind = jax.devices()[0].device_kind.lower()
    except Exception:  # defensive: fall back to v5e-safe defaults
        pass
    if any(tag in kind for tag in ("v7", "7x")):
        # v7x: 64 MiB VMEM per TC -> keep the 4x double-buffered in+out
        # working set ~16 MiB and leave compiler-scratch headroom; 3.2 TB/s
        # HBM makes tiny copies pure launch overhead -> higher XLA threshold.
        return {"tile_bytes": 4 << 20, "vmem_limit": 48 << 20, "min_bytes": 4 << 20}
    if "v6" in kind:
        # v6e: 128 MiB VMEM -> 8 MiB tiles (4x = 32 MiB working set) with an
        # explicit 64 MiB scoped-VMEM limit.
        return {"tile_bytes": 8 << 20, "vmem_limit": 64 << 20, "min_bytes": 2 << 20}
    # v5e / unknown: 2 MiB tiles (4x = 8 MiB, well under the 16 MiB scoped
    # default); no benefit beyond ~2 MiB at ~0.8 TB/s HBM anyway.
    return {"tile_bytes": 2 << 20, "vmem_limit": 32 << 20, "min_bytes": 1 << 20}


def _choose_tiles(Lp, R, C, itemsize, sub_align, tile_bytes):
    """Pick (bL, tr, tc) with bL*tr*tc*itemsize <= tile_bytes.

    tc is 128-dense (or the full dim) and tr is sublane-aligned (or the full
    dim), so both the input and output BlockSpecs satisfy the (8,128) rules;
    ragged boundary blocks are handled by a cdiv grid.
    """
    budget = max(tile_bytes // itemsize, sub_align * 128)
    tr_min = R if R <= sub_align else sub_align
    # Lane (last output) dim.
    if C <= 128:
        tc = C                                   # full dim (forced paths only)
    else:
        tc = min(C, max(128, budget // max(tr_min, 1)))
        tc = max(128, (tc // 128) * 128)
    # Sublane (second-to-last output) dim.
    if R <= sub_align:
        tr = R                                   # full dim
    else:
        tr = min(R, max(sub_align, budget // tc))
        tr = max(sub_align, (tr // sub_align) * sub_align)
    # Flattened-leading dim: soak up the rest of the per-tile byte budget.
    bL = max(1, min(Lp, budget // max(tr * tc, 1)))
    return bL, tr, tc


def _squeeze_relayout_pallas(x, dim, out_shape, hw):
    """Tiled, lane-dense copy realizing a squeeze of one of the last two dims."""
    if x.size == 0:
        return jnp.reshape(x, out_shape)

    ndim = x.ndim
    squeeze_last = dim == ndim - 1               # (..., R, C, 1) -> (..., R, C)
    leading = tuple(out_shape[:-2])
    Lp = math.prod(leading) if leading else 1
    R, C = out_shape[-2], out_shape[-1]

    itemsize = jnp.dtype(x.dtype).itemsize
    sub_align = {4: 8, 2: 16, 1: 32}.get(itemsize, 8)

    # Pre-flatten the leading dims (metadata-only: the last two input dims are
    # untouched) so they can be folded into the block instead of the grid.
    x3 = jnp.reshape(x, (Lp,) + x.shape[len(leading):])

    bL, tr, tc = _choose_tiles(Lp, R, C, itemsize, sub_align, hw["tile_bytes"])

    # v7x megacore: ensure >= 2 grid steps whenever there is data to split.
    if pl.cdiv(Lp, bL) * pl.cdiv(R, tr) * pl.cdiv(C, tc) == 1:
        if Lp >= 2:
            bL = pl.cdiv(Lp, 2)
        elif R >= 2 * sub_align:
            tr = max(sub_align, ((R // 2) // sub_align) * sub_align)
        elif C >= 256:
            tc = max(128, ((C // 2) // 128) * 128)

    sizes = (pl.cdiv(Lp, bL), pl.cdiv(R, tr), pl.cdiv(C, tc))
    # Largest-extent axis first: that is where the megacore split lands; every
    # axis is independent ("parallel") for this pure copy, so order is free.
    order = sorted(range(3), key=lambda a: -sizes[a])
    grid = tuple(sizes[a] for a in order)
    pos = [order.index(a) for a in range(3)]     # logical axis -> grid position

    def _logical(g):
        return g[pos[0]], g[pos[1]], g[pos[2]]

    def out_index_map(*g):
        return _logical(g)

    if squeeze_last:
        in_block = (bL, tr, tc, pl.Squeezed())

        def in_index_map(*g):
            l, i, j = _logical(g)
            return (l, i, j, 0)
    else:
        in_block = (bL, tr, pl.Squeezed(), tc)

        def in_index_map(*g):
            l, i, j = _logical(g)
            return (l, i, 0, j)

    # Honest HBM traffic: the size-1 minor dim is layout-padded (to 128 lanes
    # when it is the last dim, to the sublane count otherwise), so real reads
    # cost far more than the logical bytes.
    read_pad = 128 if squeeze_last else sub_align
    out_elems = Lp * R * C
    bytes_accessed = int(out_elems * itemsize * (read_pad + 1))

    y = pl.pallas_call(
        _copy_kernel,
        out_shape=jax.ShapeDtypeStruct((Lp, R, C), x.dtype),
        grid=grid,
        in_specs=[pl.BlockSpec(in_block, in_index_map)],
        out_specs=pl.BlockSpec((bL, tr, tc), out_index_map),
        compiler_params=pltpu.CompilerParams(
            dimension_semantics=("parallel",) * len(grid),
            vmem_limit_bytes=hw["vmem_limit"],
        ),
        cost_estimate=pl.CostEstimate(
            flops=0, transcendentals=0, bytes_accessed=bytes_accessed),
    )(x3)

    # Metadata-only: only leading dims change, last two dims (R, C) preserved.
    return jnp.reshape(y, out_shape)


def squeeze_pallas(x, dim, *, use_pallas=None):
    """Equivalent of torch.Tensor.squeeze(dim).

    use_pallas: None -> auto dispatch (Pallas only where it wins);
    True / False -> force / forbid the Pallas copy kernel.
    """
    ndim = x.ndim
    if ndim == 0:
        return x
    dim = dim % ndim
    if x.shape[dim] != 1:
        # torch.squeeze(dim) is a no-op when that dim is not size 1.
        return x

    out_shape = tuple(s for i, s in enumerate(x.shape) if i != dim)
    relayout = dim >= ndim - 2 and len(out_shape) >= 2
    if not relayout or use_pallas is False:
        # Leading-axis squeeze (or rank-<2 result): the (sublane, lane) tiled
        # layout is unchanged -> metadata-only reshape, zero HBM traffic.
        return jnp.reshape(x, out_shape)

    hw = _hw_params()
    if use_pallas is not True:
        if dim == ndim - 1:
            # Size-1 last dim is padded to 128 lanes in HBM: any copy kernel
            # reads at ~1/128 of HBM BW regardless of tiling.  Let XLA fuse
            # the relayout into the consumer instead of materializing it.
            return jnp.reshape(x, out_shape)
        if out_shape[-1] % 128 != 0:
            # Non-lane-dense output -> masked vst.msk partial stores; XLA's
            # own relayout is no worse, the kernel only adds overhead.
            return jnp.reshape(x, out_shape)
        if x.size * jnp.dtype(x.dtype).itemsize < hw["min_bytes"]:
            # Launch + pipeline-warmup overhead dominates a tiny copy.
            return jnp.reshape(x, out_shape)

    return _squeeze_relayout_pallas(x, dim, out_shape, hw)


if __name__ == "__main__":
    key = jax.random.PRNGKey(0)
    k1, k2, k3, k4 = jax.random.split(key, 4)

    # 1) Leading-dim squeeze (NCHW, dim=1): metadata-only bypass path.
    x1 = jax.random.normal(k1, (2, 1, 16, 16), dtype=jnp.float32)
    y1 = squeeze_pallas(x1, 1)
    jax.block_until_ready(y1)
    ref1 = jnp.squeeze(x1, axis=1)
    assert y1.shape == ref1.shape and y1.dtype == ref1.dtype
    assert bool(jnp.array_equal(y1, ref1))

    # 2) Second-to-last-dim squeeze with multiple leading dims folded into the
    #    block (bL > 1), forced onto the Pallas copy kernel (bf16).
    x2 = jax.random.normal(k2, (2, 3, 4, 1, 256), dtype=jnp.bfloat16)
    y2 = squeeze_pallas(x2, 3, use_pallas=True)
    jax.block_until_ready(y2)
    ref2 = jnp.squeeze(x2, axis=3)
    assert y2.shape == ref2.shape and y2.dtype == ref2.dtype
    assert bool(jnp.array_equal(y2, ref2))

    # 3) Second-to-last-dim squeeze with ragged sublane tiling (R=12, tr=8)
    #    and largest-axis-first grid reordering.
    x3 = jax.random.normal(k3, (2, 12, 1, 256), dtype=jnp.float32)
    y3 = squeeze_pallas(x3, -2, use_pallas=True)
    jax.block_until_ready(y3)
    ref3 = jnp.squeeze(x3, axis=-2)
    assert y3.shape == ref3.shape and y3.dtype == ref3.dtype
    assert bool(jnp.array_equal(y3, ref3))

    # 4) Last-dim squeeze: auto path leaves the ~1/128-bandwidth relayout to
    #    XLA fusion; forcing it exercises the (bL, tr, tc, Squeezed) in_spec.
    x4 = jax.random.normal(k4, (2, 4, 128, 1), dtype=jnp.float32)
    ref4 = jnp.squeeze(x4, axis=-1)
    y4 = squeeze_pallas(x4, -1)                    # auto -> XLA reshape
    y5 = squeeze_pallas(x4, -1, use_pallas=True)   # forced -> Pallas copy
    jax.block_until_ready((y4, y5))
    assert y4.shape == ref4.shape and bool(jnp.array_equal(y4, ref4))
    assert y5.shape == ref4.shape and y5.dtype == ref4.dtype
    assert bool(jnp.array_equal(y5, ref4))

    # 5) torch no-op path (dim not size 1): returns the input unchanged.
    z = squeeze_pallas(x1, 0)
    jax.block_until_ready(z)
    assert z.shape == x1.shape

    print("KERNEL_OK")
</pallas_src>

<mosaic_0001>
module attributes {stable_mosaic.version = 11 : i64} {
  func.func @_copy_kernel(%arg0: i32, %arg1: i32, %arg2: i32, %arg3: memref<3x4x1x256xbf16, #tpu.memory_space<vmem>>, %arg4: memref<3x4x256xbf16, #tpu.memory_space<vmem>>) attributes {dimension_semantics = [#tpu.dimension_semantics<parallel>, #tpu.dimension_semantics<parallel>, #tpu.dimension_semantics<parallel>], iteration_bounds = array<i64: 2, 1, 1>, scalar_prefetch = 0 : i64, scratch_operands = 0 : i64, tpu.core_type = #tpu.core_type<tc>, window_params = [{transform_indices = @transform_0, window_bounds = array<i64: 3, 4, 1, 256>}, {transform_indices = @transform_1, window_bounds = array<i64: 3, 4, 256>}]} {
    %c0 = arith.constant 0 : index
    %c0_0 = arith.constant 0 : index
    %c0_1 = arith.constant 0 : index
    %c0_2 = arith.constant 0 : index
    %0 = vector.load %arg3[%c0, %c0_0, %c0_1, %c0_2] : memref<3x4x1x256xbf16, #tpu.memory_space<vmem>>, vector<3x4x1x256xbf16>
    %1 = vector.shape_cast %0 : vector<3x4x1x256xbf16> to vector<3x4x256xbf16>
    %c0_3 = arith.constant 0 : index
    %c0_4 = arith.constant 0 : index
    %c0_5 = arith.constant 0 : index
    %2 = vector.load %arg4[%c0_3, %c0_4, %c0_5] : memref<3x4x256xbf16, #tpu.memory_space<vmem>>, vector<3x4x256xbf16>
    tpu.vector_store %arg4[%c0_3, %c0_4, %c0_5], %1 {strides = array<i32>} : memref<3x4x256xbf16, #tpu.memory_space<vmem>>, vector<3x4x256xbf16>,
    return
  }
  func.func @transform_0(%arg0: i32, %arg1: i32, %arg2: i32) -> (i32, i32, i32, i32) {
    %c0_i32 = arith.constant 0 : i32
    %c0_i32_0 = arith.constant 0 : i32
    return %arg0, %arg1, %c0_i32, %arg2 : i32, i32, i32, i32
  }
  func.func @transform_1(%arg0: i32, %arg1: i32, %arg2: i32) -> (i32, i32, i32) {
    %c0_i32 = arith.constant 0 : i32
    return %arg0, %arg1, %arg2 : i32, i32, i32
  }
}

</mosaic_0001>

<llo_original>
// kernel: tpu_custom_call.1
$region0: #{tpu_custom_call.1}
  #allocation0 [shape = 'u32[]', space=smem, size = 0x4, offset = 0x4, fixed_abs, tag = 'smem constant byte address 0x4 - core index']
  #allocation1 [shape = 'u32[72,128]{1,0:T(1,128)}', space=vmem, size = 0x9000, scoped, tag = 'internal scratch']
  %s0 = inlined_call_operand.vmem [shape: bf16[6,4,1,256], index: 0, kind: input, shape index: {}]
  %s1 = inlined_call_operand.hbm [shape: bf16[6,4,256], index: 1, kind: output, shape index: {}]
  %s2 = sld [smem:[#allocation0]]
  $region37: #{tpu_custom_call.1} parent=0
    _
  %s4 = ssub.s32 1, %s2
  %s5 = scalar_select 0, %s4, %s2
  $region1: #{tpu_custom_call.1} parent=0
    #allocation2 [shape = 'u8[12288]{0}', space=vmem, size = 0x3000, scoped, tag = 'output window, operand 0']
    #allocation3 [shape = 's32[2]{0}', space=sflag, size = 0x8, scoped, tag = 'scoped memory for tpu_custom_call.1']
    %6 = vsyncpa [#allocation3], 0
    %s7 = scalar_lea.sflag [#allocation3], 1
    %8 = vsyncpa %s7, 0
    loop: start=0, step=1, limit=4
    $region2: #{tpu_custom_call.1} parent=1 // loop_pre_header
      _
    $region3: #{tpu_custom_call.1} parent=1 // loop_header
      %s10 = sphi 0, %s14
      %p11 = scmp.ge.s32.totalorder %s10, 4
      %s17 = sphi 0, %s36
      %s18 = sphi 0, %s32
      %s19 = sphi 0, %s28
      %s20 = sphi 0, %s17
      %s21 = sphi 0, %s18
      %s22 = sphi 0, %s19
      %s23 = sphi 0, %s20
      %s24 = sphi 0, %s21
      %s25 = sphi 0, %s22
      %s43 = sphi 0, %s45
      %s46 = sphi 0, %s43
      %s47 = sphi 0, %s46
      %s63 = sphi 0, %s47
      %s73 = sphi 0, %s75
      %s76 = sphi 0, %s73
      %s77 = sphi 0, %s76
      %s93 = sphi 0, %s77
    $region4: #{tpu_custom_call.1} parent=1 // loop_header_branch
      %13 = sbr.rel (%p11) target = $region8
    $region5: #{tpu_custom_call.1} parent=1 // loop_body
      %s15 = ssub.s32 %s10, 1
      %s16 = ssub.s32 %s10, 2
      %s26 = sadd.s32 1, %s19
      %p27 = scmp.ge.s32.totalorder %s26, 1
      %s28 = scalar_select %p27, 0, %s26
      %s29 = sadd.s32 1, %s18
      %s30 = scalar_select %p27, %s29, %s18
      %p31 = scmp.ge.s32.totalorder %s30, 1
      %s32 = scalar_select %p31, 0, %s30
      %s33 = sadd.s32 1, %s17
      %s34 = scalar_select %p31, %s33, %s17
      %p35 = scmp.ge.s32.totalorder %s34, 2
      %s36 = scalar_select %p35, 0, %s34
      %s37 = ssub.s32 %s17, %s36
      %s38 = ssub.s32 %s18, %s32
      %s39 = sor.u32 %s37, %s38
      %s40 = ssub.s32 %s19, %s28
      %s41 = sor.u32 %s39, %s40
      %p42 = scmp.eq.s32.totalorder %s41, 0
      %s44 = sadd.s32 %s43, 1
      %s45 = scalar_select %p42, %s43, %s44
      %p48 = pneg %p42
      %p49 = scmp.eq.s32.totalorder %s10, 1
      %p50 = por %p48, %p49
      %p51 = scmp.ne.s32.totalorder %s43, %s46
      %p52 = scmp.eq.s32.totalorder %s10, 0
      %p53 = por %p51, %p52
      %p54 = scmp.ne.s32.totalorder %s43, %s46
      %p55 = scmp.eq.s32.totalorder %s15, 1
      %p56 = por %p54, %p55
      %p57 = scmp.ne.s32.totalorder %s46, %s47
      %p58 = scmp.eq.s32.totalorder %s15, 0
      %p59 = por %p57, %p58
      %p60 = scmp.ne.s32.totalorder %s46, %s47
      %p61 = scmp.eq.s32.totalorder %s16, 1
      %p62 = por %p60, %p61
      %p64 = scmp.ne.s32.totalorder %s47, %s63
      %p65 = scmp.eq.s32.totalorder %s16, 0
      %p66 = por %p64, %p65
      %s67 = ssub.s32 %s17, %s36
      %s68 = ssub.s32 %s18, %s32
      %s69 = sor.u32 %s67, %s68
      %s70 = ssub.s32 %s19, %s28
      %s71 = sor.u32 %s69, %s70
      %p72 = scmp.eq.s32.totalorder %s71, 0
      %s74 = sadd.s32 %s73, 1
      %s75 = scalar_select %p72, %s73, %s74
      %p78 = pneg %p72
      %p79 = scmp.eq.s32.totalorder %s10, 1
      %p80 = por %p78, %p79
      %p81 = scmp.ne.s32.totalorder %s73, %s76
      %p82 = scmp.eq.s32.totalorder %s10, 0
      %p83 = por %p81, %p82
      %p84 = scmp.ne.s32.totalorder %s73, %s76
      %p85 = scmp.eq.s32.totalorder %s15, 1
      %p86 = por %p84, %p85
      %p87 = scmp.ne.s32.totalorder %s76, %s77
      %p88 = scmp.eq.s32.totalorder %s15, 0
      %p89 = por %p87, %p88
      %p90 = scmp.ne.s32.totalorder %s76, %s77
      %p91 = scmp.eq.s32.totalorder %s16, 1
      %p92 = por %p90, %p91
      %p94 = scmp.ne.s32.totalorder %s77, %s93
      %p95 = scmp.eq.s32.totalorder %s16, 0
      %p96 = por %p94, %p95
      %p97 = scmp.le.s32.totalorder 1, %s10
      %p98 = scmp.lt.s32.totalorder %s10, 3
      %p99 = pnand %p97, %p98
      %p100 = pneg %p99
      // Predicated region
      $region9: #{tpu_custom_call.1} parent=5 // pred_check
        _
      $region10: #{tpu_custom_call.1} parent=5 // pred_check_branch
        %102 = sbr.rel (%p99) target = $region12
      $region11: #{tpu_custom_call.1} parent=5 // pred_region
        %s103 = ssub.s32 %s10, 1
      $region12: #{tpu_custom_call.1} parent=5 // pred_fallthru
        _
      %p104 = scmp.lt.s32.totalorder %s10, 2
      // Predicated region
      $region13: #{tpu_custom_call.1} parent=5 // pred_check
        %p105 = pneg %p104
      $region14: #{tpu_custom_call.1} parent=5 // pred_check_branch
        %107 = sbr.rel (%p105) target = $region16
      $region15: #{tpu_custom_call.1} parent=5 // pred_region
        // Predicated region
        $region17: #{tpu_custom_call.1} parent=15 // pred_check
          %p108 = pneg %p53
        $region18: #{tpu_custom_call.1} parent=15 // pred_check_branch
          %110 = sbr.rel (%p108) target = $region20
        $region19: #{tpu_custom_call.1} parent=15 // pred_region
          %s111 = smul.u32 3, %s17
          %s112 = smul.u32 4, %s18
          %s113 = smul.u32 2, %s19
          %p114 = scmp.lt.s32.totalorder %s111, 5
          %s115 = scalar_select %p114, %s111, 5
          %p116 = scmp.lt.s32.totalorder %s112, 3
          %s117 = scalar_select %p116, %s112, 3
          %p118 = scmp.lt.s32.totalorder %s113, 1
          %s119 = scalar_select %p118, %s113, 1
          %s120 = smul.addr %s117, 2
          %s121 = sadd.s32 %s119, %s120
          %s122 = smul.addr %s115, 8
          %s123 = sadd.s32 %s121, %s122
          %s124 = scalar_lea.vmem %s0, %s123
          %s125 = smul.u32 3, %s17
          %s126 = smul.u32 4, %s18
          %s127 = smul.u32 2, %s19
        $region20: #{tpu_custom_call.1} parent=15 // pred_fallthru
          _
      $region16: #{tpu_custom_call.1} parent=5 // pred_fallthru
        _
      %p128 = scmp.le.s32.totalorder 1, %s10
      %p129 = scmp.lt.s32.totalorder %s10, 3
      %p130 = pnand %p128, %p129
      %p131 = pneg %p130
      // Predicated region
      $region21: #{tpu_custom_call.1} parent=5 // pred_check
        _
      $region22: #{tpu_custom_call.1} parent=5 // pred_check_branch
        %133 = sbr.rel (%p130) target = $region24
      $region23: #{tpu_custom_call.1} parent=5 // pred_region
        %s134 = ssub.s32 %s10, 1
        %s135 = smul.u32 3, %s20
        %s136 = smul.u32 4, %s21
        %s137 = smul.u32 2, %s22
        %p138 = scmp.lt.s32.totalorder %s135, 5
        %s139 = scalar_select %p138, %s135, 5
        %p140 = scmp.lt.s32.totalorder %s136, 3
        %s141 = scalar_select %p140, %s136, 3
        %p142 = scmp.lt.s32.totalorder %s137, 1
        %s143 = scalar_select %p142, %s137, 1
        %s144 = smul.addr %s141, 2
        %s145 = sadd.s32 %s143, %s144
        %s146 = smul.addr %s139, 8
        %s147 = sadd.s32 %s145, %s146
        %s148 = scalar_lea.vmem %s0, %s147
        %p149 = pneg %p59
        %p150 = pneg %p56
        %p151 = pneg %p89
        %p152 = pneg %p86
        %s153 = sand.u32 %s76, 1
        %s154 = scalar_lea.sflag [#allocation3], %s153
        %s155 = sand.u32 %s76, 1
        %s156 = smul.addr %s155, 12
        %s157 = scalar_lea.vmem [#allocation2], %s156
        %s158 = smul.u32 3, %s20
        %s159 = smul.u32 4, %s21
        %s160 = smul.u32 2, %s22
        %p161 = scmp.lt.s32.totalorder %s158, 5
        %s162 = scalar_select %p161, %s158, 5
        %p163 = scmp.lt.s32.totalorder %s159, 3
        %s164 = scalar_select %p163, %s159, 3
        %p165 = scmp.lt.s32.totalorder %s160, 1
        %s166 = scalar_select %p165, %s160, 1
        %s167 = smul.addr %s164, 2
        %s168 = sadd.s32 %s166, %s167
        %s169 = smul.addr %s162, 8
        %s170 = sadd.s32 %s168, %s169
        %s171 = scalar_lea.vmem %s0, %s170
        %s172 = smul.u32 3, %s20
        %s173 = smul.u32 4, %s21
        %s174 = smul.u32 2, %s22
        %s175 = smul.u32 3, %s20
        %s176 = smul.u32 2, %s22
        %v177 = vld [vmem:[%s171] sm:$0x3]
        %v178 = vld [vmem:[%s171 + $0x2] sm:$0x3]
        %v179 = vld [vmem:[%s171 + $0x4] sm:$0x3]
        %v180 = vld [vmem:[%s171 + $0x6] sm:$0x3]
        %v181 = vld [vmem:[%s171 + $0x8] sm:$0x3]
        %v182 = vld [vmem:[%s171 + $0xa] sm:$0x3]
        %v183 = vld [vmem:[%s171 + $0xc] sm:$0x3]
        %v184 = vld [vmem:[%s171 + $0xe] sm:$0x3]
        %v185 = vld [vmem:[%s171 + $0x10] sm:$0x3]
        %v186 = vld [vmem:[%s171 + $0x12] sm:$0x3]
        %v187 = vld [vmem:[%s171 + $0x14] sm:$0x3]
        %v188 = vld [vmem:[%s171 + $0x16] sm:$0x3]
        %190 = vst [vmem:[#allocation1] ss:$2 sm:$0xff] %v177
        %v191 = vld [vmem:[#allocation1] sm:$0xff]
        %s193 = scalar_lea.vmem [#allocation1], 16
        %194 = vst [vmem:[%s193] ss:$2 sm:$0xff] %v178
        %v195 = vld [vmem:[#allocation1 + $0x10] sm:$0xff]
        %s197 = scalar_lea.vmem [#allocation1], 32
        %198 = vst [vmem:[%s197] ss:$2 sm:$0xff] %v179
        %v199 = vld [vmem:[#allocation1 + $0x20] sm:$0xff]
        %s201 = scalar_lea.vmem [#allocation1], 48
        %202 = vst [vmem:[%s201] ss:$2 sm:$0xff] %v180
        %v203 = vld [vmem:[#allocation1 + $0x30] sm:$0xff]
        %205 = vst [vmem:[#allocation1] ss:$2 sm:$0xff] %v181
        %v206 = vld [vmem:[#allocation1] sm:$0xff]
        %208 = vst [vmem:[%s193] ss:$2 sm:$0xff] %v182
        %v209 = vld [vmem:[#allocation1 + $0x10] sm:$0xff]
        %211 = vst [vmem:[%s197] ss:$2 sm:$0xff] %v183
        %v212 = vld [vmem:[#allocation1 + $0x20] sm:$0xff]
        %214 = vst [vmem:[%s201] ss:$2 sm:$0xff] %v184
        %v215 = vld [vmem:[#allocation1 + $0x30] sm:$0xff]
        %217 = vst [vmem:[#allocation1] ss:$2 sm:$0xff] %v185
        %v218 = vld [vmem:[#allocation1] sm:$0xff]
        %220 = vst [vmem:[%s193] ss:$2 sm:$0xff] %v186
        %v221 = vld [vmem:[#allocation1 + $0x10] sm:$0xff]
        %223 = vst [vmem:[%s197] ss:$2 sm:$0xff] %v187
        %v224 = vld [vmem:[#allocation1 + $0x20] sm:$0xff]
        %226 = vst [vmem:[%s201] ss:$2 sm:$0xff] %v188
        %v227 = vld [vmem:[#allocation1 + $0x30] sm:$0xff]
        %228 = vst [vmem:[#allocation1] ss:$2 sm:$0xff] %v191
        %v229 = vld.sshfl [vmem:[#allocation1] sm:$0xff pattern:$0x75643120]
        %s231 = scalar_lea.vmem [#allocation1], 16
        %232 = vst [vmem:[%s231] ss:$2 sm:$0xff] %v195
        %v233 = vld.sshfl [vmem:[#allocation1 + $0x10] sm:$0xff pattern:$0x75643120]
        %s235 = scalar_lea.vmem [#allocation1], 32
        %236 = vst [vmem:[%s235] ss:$2 sm:$0xff] %v199
        %v237 = vld.sshfl [vmem:[#allocation1 + $0x20] sm:$0xff pattern:$0x75643120]
        %s239 = scalar_lea.vmem [#allocation1], 48
        %240 = vst [vmem:[%s239] ss:$2 sm:$0xff] %v203
        %v241 = vld.sshfl [vmem:[#allocation1 + $0x30] sm:$0xff pattern:$0x75643120]
        %243 = vst [vmem:[#allocation1] ss:$2 sm:$0xff] %v206
        %v244 = vld.sshfl [vmem:[#allocation1] sm:$0xff pattern:$0x75643120]
        %246 = vst [vmem:[%s231] ss:$2 sm:$0xff] %v209
        %v247 = vld.sshfl [vmem:[#allocation1 + $0x10] sm:$0xff pattern:$0x75643120]
        %249 = vst [vmem:[%s235] ss:$2 sm:$0xff] %v212
        %v250 = vld.sshfl [vmem:[#allocation1 + $0x20] sm:$0xff pattern:$0x75643120]
        %252 = vst [vmem:[%s239] ss:$2 sm:$0xff] %v215
        %v253 = vld.sshfl [vmem:[#allocation1 + $0x30] sm:$0xff pattern:$0x75643120]
        %255 = vst [vmem:[#allocation1] ss:$2 sm:$0xff] %v218
        %v256 = vld.sshfl [vmem:[#allocation1] sm:$0xff pattern:$0x75643120]
        %258 = vst [vmem:[%s231] ss:$2 sm:$0xff] %v221
        %v259 = vld.sshfl [vmem:[#allocation1 + $0x10] sm:$0xff pattern:$0x75643120]
        %261 = vst [vmem:[%s235] ss:$2 sm:$0xff] %v224
        %v262 = vld.sshfl [vmem:[#allocation1 + $0x20] sm:$0xff pattern:$0x75643120]
        %264 = vst [vmem:[%s239] ss:$2 sm:$0xff] %v227
        %v265 = vld.sshfl [vmem:[#allocation1 + $0x30] sm:$0xff pattern:$0x75643120]
        %v267 = vunpack.c.l.b16 %v229
        %v268 = vunpack.c.h.b16 %v229
        %v269 = vunpack.c.l.b16 %v233
        %v270 = vunpack.c.h.b16 %v233
        %v271 = vunpack.c.l.b16 %v237
        %v272 = vunpack.c.h.b16 %v237
        %v273 = vunpack.c.l.b16 %v241
        %v274 = vunpack.c.h.b16 %v241
        %v275 = vunpack.c.l.b16 %v244
        %v276 = vunpack.c.h.b16 %v244
        %v277 = vunpack.c.l.b16 %v247
        %v278 = vunpack.c.h.b16 %v247
        %v279 = vunpack.c.l.b16 %v250
        %v280 = vunpack.c.h.b16 %v250
        %v281 = vunpack.c.l.b16 %v253
        %v282 = vunpack.c.h.b16 %v253
        %v283 = vunpack.c.l.b16 %v256
        %v284 = vunpack.c.h.b16 %v256
        %v285 = vunpack.c.l.b16 %v259
        %v286 = vunpack.c.h.b16 %v259
        %v287 = vunpack.c.l.b16 %v262
        %v288 = vunpack.c.h.b16 %v262
        %v289 = vunpack.c.l.b16 %v265
        %v290 = vunpack.c.h.b16 %v265
        %v291 = vrot.slane %v269, 7
        %vm292 = vcmask 1041409
        %v293 = vsel %vm292, %v291, %v267
        %v294 = vrot.slane %v271, 6
        %vm295 = vcmask 1042434
        %v296 = vsel %vm295, %v294, %v293
        %v297 = vrot.slane %v273, 5
        %vm298 = vcmask 1043459
        %v299 = vsel %vm298, %v297, %v296
        %v300 = vrot.slane %v270, 7
        %v301 = vsel %vm292, %v300, %v268
        %v302 = vrot.slane %v272, 6
        %v303 = vsel %vm295, %v302, %v301
        %v304 = vrot.slane %v274, 5
        %v305 = vsel %vm298, %v304, %v303
        %v306 = vrot.slane %v277, 7
        %v307 = vsel %vm292, %v306, %v275
        %v308 = vrot.slane %v279, 6
        %v309 = vsel %vm295, %v308, %v307
        %v310 = vrot.slane %v281, 5
        %v311 = vsel %vm298, %v310, %v309
        %v312 = vrot.slane %v278, 7
        %v313 = vsel %vm292, %v312, %v276
        %v314 = vrot.slane %v280, 6
        %v315 = vsel %vm295, %v314, %v313
        %v316 = vrot.slane %v282, 5
        %v317 = vsel %vm298, %v316, %v315
        %v318 = vrot.slane %v285, 7
        %v319 = vsel %vm292, %v318, %v283
        %v320 = vrot.slane %v287, 6
        %v321 = vsel %vm295, %v320, %v319
        %v322 = vrot.slane %v289, 5
        %v323 = vsel %vm298, %v322, %v321
        %v324 = vrot.slane %v286, 7
        %v325 = vsel %vm292, %v324, %v284
        %v326 = vrot.slane %v288, 6
        %v327 = vsel %vm295, %v326, %v325
        %v328 = vrot.slane %v290, 5
        %v329 = vsel %vm298, %v328, %v327
        %v330 = vpack.c.b16 %v305, %v299
        %v331 = vpack.c.b16 %v317, %v311
        %v332 = vpack.c.b16 %v329, %v323
        %v333 = vrot.slane %v330, 2
        %v334 = vrot.slane %v331, 2
        %v335 = vrot.slane %v332, 2
        %vm336 = vcmask 1041408
        %v339 = vsel %vm336, %v330, %v333
        %v342 = vsel %vm336, %v331, %v334
        %v345 = vsel %vm336, %v332, %v335
        %349 = vst [vmem:[%s157] sm:$0xf] %v339
        %350 = vst [vmem:[%s157 + $0x4] sm:$0xf] %v342
        %351 = vst [vmem:[%s157 + $0x8] sm:$0xf] %v345
        %s352 = sand.u32 %s76, 1
        %s353 = scalar_lea.sflag [#allocation3], %s352
        %s354 = sand.u32 %s76, 1
        %s355 = smul.addr %s354, 12
        %s356 = scalar_lea.vmem [#allocation2], %s355
        // Predicated region
        $region25: #{tpu_custom_call.1} parent=23 // pred_check
          %p357 = pneg %p86
        $region26: #{tpu_custom_call.1} parent=23 // pred_check_branch
          %359 = sbr.rel (%p357) target = $region28
        $region27: #{tpu_custom_call.1} parent=23 // pred_region
          %s360 = smul.u32 3, %s20
          %s361 = smul.u32 2, %s22
          %363 = vsyncadd %s353, 0
          %s364 = smul.addr %s21, 2
          %s365 = sadd.s32 %s361, %s364
          %s366 = smul.addr %s360, 2
          %s367 = sadd.s32 %s365, %s366
          %s368 = smul.addr %s367, 2
          %s369 = scalar_lea.hbm %s1, %s368
          %s370 = sshll.u32 %s356, 4
          %s371 = int_to_ptr.vmem [resolvable:$true] %s370
          %s372 = sshll.u32 %s369, 4
          %s373 = int_to_ptr.hbm [resolvable:$true] %s372
          %378 = dma.vmem_to_hbm [thread:$0]  %s371, 192, %s373, %s353, 64, 64, 4
        $region28: #{tpu_custom_call.1} parent=23 // pred_fallthru
          _
      $region24: #{tpu_custom_call.1} parent=5 // pred_fallthru
        _
      %p379 = scmp.le.s32.totalorder 2, %s10
      // Predicated region
      $region29: #{tpu_custom_call.1} parent=5 // pred_check
        %p380 = pneg %p379
      $region30: #{tpu_custom_call.1} parent=5 // pred_check_branch
        %382 = sbr.rel (%p380) target = $region32
      $region31: #{tpu_custom_call.1} parent=5 // pred_region
        %s383 = ssub.s32 %s10, 2
        // Predicated region
        $region33: #{tpu_custom_call.1} parent=31 // pred_check
          %p384 = pneg %p92
        $region34: #{tpu_custom_call.1} parent=31 // pred_check_branch
          %386 = sbr.rel (%p384) target = $region36
        $region35: #{tpu_custom_call.1} parent=31 // pred_region
          %s387 = sand.u32 %s77, 1
          %s388 = scalar_lea.sflag [#allocation3], %s387
          %s389 = sand.u32 %s77, 1
          %s390 = smul.addr %s389, 12
          %s391 = scalar_lea.vmem [#allocation2], %s390
          %393 = dma.done %s388, 192
        $region36: #{tpu_custom_call.1} parent=31 // pred_fallthru
          _
      $region32: #{tpu_custom_call.1} parent=5 // pred_fallthru
        _
    $region6: #{tpu_custom_call.1} parent=1 // loop_footer
      %s14 = sadd.s32 1, %s10
    $region7: #{tpu_custom_call.1} parent=1 // loop_footer_branch
      %9 = sbr.rel target = $region3
    $region8: #{tpu_custom_call.1} parent=1 // loop_exit
      _
    %394 = vsyncpa [#allocation3], 1
    %s395 = scalar_lea.sflag [#allocation3], 1
    %396 = vsyncpa %s395, 1

</llo_original>
